<compile_context>
chip_gen: v7x
topology: tpu7x:2x2x1
jax: 0.10.0
libtpu: 0.0.40
codegen_flags: <defaults>
</compile_context>

<pallas_src>
import jax
import jax.numpy as jnp
from jax.experimental import pallas as pl
from jax.experimental.pallas import tpu as pltpu

GAMMA = 1.5
ALPHA = 0.25
LANE = 128
MAX_TILE_ROWS = 8192          # 8192 * 128 * 4B = 4 MiB per f32 input tile
CHUNK_ROWS = 512              # inner accumulation chunk (256 KiB f32)
VMEM_LIMIT_BYTES = 40 * 1024 * 1024   # > v5e's 16 MiB default, < v7x's ~48 MiB cap


def _round_up(x, m):
    return ((x + m - 1) // m) * m


def _make_qfocal_kernel(tile_rows, chunk_rows, rows_valid, needs_mask, gamma, alpha):
    n_chunks = tile_rows // chunk_rows

    def kernel(pred_ref, true_ref, out_ref):
        block_row0 = pl.program_id(0) * tile_rows

        def body(c, acc):
            start = pl.multiple_of(c * chunk_rows, chunk_rows)
            x = pred_ref[pl.ds(start, chunk_rows), :].astype(jnp.float32)
            y = true_ref[pl.ds(start, chunk_rows), :].astype(jnp.float32)

            # Shared transcendentals: e = exp(-|x|) feeds both the stable BCE
            # and the sigmoid; one_plus_e feeds both log and reciprocal.
            # EUP pushes per element: exp, log, rcp (approx), sqrt.
            e = jnp.exp(-jnp.abs(x))
            one_plus_e = 1.0 + e
            inv = pl.reciprocal(one_plus_e, approx=True)

            # BCEWithLogitsLoss (reduction='none'): max(x,0) - x*y + log(1+e^-|x|)
            bce = jnp.maximum(x, 0.0) - x * y + jnp.log(one_plus_e)

            # sigmoid(x): x>=0 -> 1/(1+e) ; x<0 -> e/(1+e)
            pred_prob = jnp.where(x >= 0.0, inv, e * inv)

            # alpha_factor = y*a + (1-y)*(1-a), folded into one FMA.
            alpha_factor = (1.0 - alpha) + y * (2.0 * alpha - 1.0)

            z = jnp.abs(y - pred_prob)
            if gamma == 1.5:
                mod = z * jnp.sqrt(z)      # |y-p|**1.5 without exp(1.5*log(z))
            elif gamma == 2.0:
                mod = z * z
            elif gamma == 1.0:
                mod = z
            else:
                mod = z ** gamma

            loss = bce * alpha_factor * mod

            if needs_mask:
                # Mask rows past the valid extent (Pallas-padded last block
                # reads unspecified data; `where` selects 0 even for NaN/Inf).
                row_ids = block_row0 + start + jax.lax.broadcasted_iota(
                    jnp.int32, (chunk_rows, LANE), 0)
                loss = jnp.where(row_ids < rows_valid, loss, 0.0)

            # Partial reduce along the leading axis only: pure VPU vreg adds,
            # no cross-lane XLU reduce inside the kernel.
            return acc + loss.reshape(chunk_rows // 8, 8, LANE).sum(axis=0)

        acc = jax.lax.fori_loop(0, n_chunks, body,
                                jnp.zeros((8, LANE), jnp.float32))
        out_ref[...] = acc

    return kernel


def qfocal_loss(pred, true, *, gamma=GAMMA, alpha=ALPHA, reduction="mean",
                max_tile_rows=MAX_TILE_ROWS, chunk_rows=CHUNK_ROWS):
    """Quality focal loss with BCEWithLogitsLoss semantics (mean/sum reduction)."""
    assert pred.shape == true.shape
    n_elems = pred.size

    itemsize = jnp.dtype(pred.dtype).itemsize
    sub = 8 if itemsize >= 4 else (16 if itemsize == 2 else 32)

    pred_flat = pred.reshape(-1)
    true_flat = true.reshape(-1)

    rem = n_elems % LANE
    if rem:
        # Only non-lane-aligned element counts pay a (whole-array) pad copy,
        # and only by <=127 elements. pred=0 / true=0.5 => |0.5 - sigmoid(0)|
        # == 0 => exactly zero loss contribution for any gamma > 0.
        pad = LANE - rem
        pred_flat = jnp.concatenate(
            [pred_flat, jnp.zeros((pad,), pred_flat.dtype)])
        true_flat = jnp.concatenate(
            [true_flat, jnp.full((pad,), 0.5, true_flat.dtype)])

    rows = pred_flat.size // LANE
    pred2d = pred_flat.reshape(rows, LANE)     # free reshape, no copy
    true2d = true_flat.reshape(rows, LANE)

    # Inner chunk: multiple of the sublane granularity, never bigger than data.
    chunk = _round_up(min(chunk_rows, _round_up(rows, sub)), sub)
    # Tile: as big as allowed (amortize ~0.35us per-step cost), multiple of chunk.
    tile_rows = _round_up(min(max_tile_rows, _round_up(rows, chunk)), chunk)
    num_blocks = pl.cdiv(rows, tile_rows)
    # v7x has 2 TensorCores: when there is more than one block's worth of work,
    # keep the block count even so the "parallel" grid shards evenly.
    if num_blocks > 1 and num_blocks % 2:
        num_blocks += 1
        tile_rows = _round_up(pl.cdiv(rows, num_blocks), chunk)
        num_blocks = pl.cdiv(rows, tile_rows)

    # Ragged tail (rows not a multiple of tile_rows) is masked in-kernel; no
    # tile-alignment padding and no full-input copies.
    needs_mask = (num_blocks * tile_rows) != rows

    kernel = _make_qfocal_kernel(tile_rows, chunk, rows, needs_mask, gamma, alpha)

    partials = pl.pallas_call(
        kernel,
        out_shape=jax.ShapeDtypeStruct((num_blocks * 8, LANE), jnp.float32),
        grid_spec=pltpu.PrefetchScalarGridSpec(
            num_scalar_prefetch=0,
            grid=(num_blocks,),
            in_specs=[
                pl.BlockSpec((tile_rows, LANE), lambda i: (i, 0)),
                pl.BlockSpec((tile_rows, LANE), lambda i: (i, 0)),
            ],
            out_specs=pl.BlockSpec((8, LANE), lambda i: (i, 0)),
        ),
        compiler_params=pltpu.CompilerParams(
            dimension_semantics=("parallel",),   # independent per-block partials
            vmem_limit_bytes=VMEM_LIMIT_BYTES,
        ),
    )(pred2d, true2d)

    total = jnp.sum(partials)   # tiny (num_blocks*8, 128) reduce in plain JAX
    if reduction == "mean":
        # Python-int divisor -> weak f32; exact up to 2^24 elements (beyond
        # that the divisor carries ~6e-8 relative error, negligible).
        return total / n_elems
    if reduction == "sum":
        return total
    # TODO(synk): reduction='none' (elementwise passthrough) would need an
    # elementwise-output kernel variant; only 'mean'/'sum' are fused here.
    raise NotImplementedError("reduction='none' not implemented in the Pallas kernel")


def qfocal_loss_ref(pred, true, gamma=GAMMA, alpha=ALPHA):
    """Pure-JAX reference mirroring the PyTorch module (reduction='mean')."""
    x = pred.astype(jnp.float32)
    y = true.astype(jnp.float32)
    bce = jnp.maximum(x, 0.0) - x * y + jnp.log1p(jnp.exp(-jnp.abs(x)))
    p = jax.nn.sigmoid(x)
    alpha_factor = y * alpha + (1.0 - y) * (1.0 - alpha)
    mod = jnp.abs(y - p) ** gamma
    return jnp.mean(bce * alpha_factor * mod)


if __name__ == "__main__":
    key = jax.random.PRNGKey(0)
    k1, k2 = jax.random.split(key)
    # NCHW-style prediction logits and soft/quality targets in [0, 1].
    shape = (2, 4, 16, 16)
    pred = jax.random.normal(k1, shape, dtype=jnp.float32)
    true = jax.random.uniform(k2, shape, dtype=jnp.float32)

    out = jax.block_until_ready(qfocal_loss(pred, true))
    ref = qfocal_loss_ref(pred, true)

    # Tolerance loosened vs. exact math because the kernel uses the approximate
    # EUP reciprocal (pl.reciprocal(approx=True), ~1e-3..1e-4 rel on sigmoid).
    assert jnp.allclose(out, ref, rtol=5e-3, atol=1e-6), (out, ref)
    print("KERNEL_OK")
</pallas_src>

<mosaic_0001>
module attributes {stable_mosaic.version = 11 : i64} {
  func.func @kernel(%arg0: i32, %arg1: memref<16x128xf32, #tpu.memory_space<vmem>>, %arg2: memref<16x128xf32, #tpu.memory_space<vmem>>, %arg3: memref<8x128xf32, #tpu.memory_space<vmem>>) attributes {dimension_semantics = [#tpu.dimension_semantics<parallel>], iteration_bounds = array<i64: 1>, scalar_prefetch = 0 : i64, scratch_operands = 0 : i64, tpu.core_type = #tpu.core_type<tc>, window_params = [{transform_indices = @transform_0, window_bounds = array<i64: 16, 128>}, {transform_indices = @transform_1, window_bounds = array<i64: 16, 128>}, {transform_indices = @transform_2, window_bounds = array<i64: 8, 128>}]} {
    %cst = arith.constant 0.000000e+00 : f32
    %0 = vector.broadcast %cst : f32 to vector<8x128xf32>
    %c0_i32 = arith.constant 0 : i32
    %c16_i32 = arith.constant 16 : i32
    %1 = arith.muli %c0_i32, %c16_i32 : i32
    %2 = tpu.assume_multiple %1, 16 : i32
    %3 = arith.index_cast %2 : i32 to index
    %c0 = arith.constant 0 : index
    %4 = vector.load %arg1[%3, %c0] : memref<16x128xf32, #tpu.memory_space<vmem>>, vector<16x128xf32>
    %5 = arith.index_cast %2 : i32 to index
    %c0_0 = arith.constant 0 : index
    %6 = vector.load %arg2[%5, %c0_0] : memref<16x128xf32, #tpu.memory_space<vmem>>, vector<16x128xf32>
    %7 = math.absf %4 : vector<16x128xf32>
    %cst_1 = arith.constant 0.000000e+00 : f32
    %8 = vector.broadcast %cst_1 : f32 to vector<16x128xf32>
    %9 = arith.subf %8, %7 : vector<16x128xf32>
    %10 = math.exp %9 : vector<16x128xf32>
    %cst_2 = arith.constant 1.000000e+00 : f32
    %11 = vector.broadcast %cst_2 : f32 to vector<16x128xf32>
    %12 = arith.addf %11, %10 : vector<16x128xf32>
    %13 = tpu.reciprocal %12 {approx = true} : vector<16x128xf32> -> vector<16x128xf32>
    %cst_3 = arith.constant 0.000000e+00 : f32
    %14 = vector.broadcast %cst_3 : f32 to vector<16x128xf32>
    %15 = arith.maximumf %4, %14 : vector<16x128xf32>
    %16 = arith.mulf %4, %6 : vector<16x128xf32>
    %17 = arith.subf %15, %16 : vector<16x128xf32>
    %18 = math.log %12 : vector<16x128xf32>
    %19 = arith.addf %17, %18 : vector<16x128xf32>
    %cst_4 = arith.constant 0.000000e+00 : f32
    %20 = vector.broadcast %cst_4 : f32 to vector<16x128xf32>
    %21 = arith.cmpf oge, %4, %20 : vector<16x128xf32>
    %22 = arith.mulf %10, %13 : vector<16x128xf32>
    %23 = arith.select %21, %13, %22 : vector<16x128xi1>, vector<16x128xf32>
    %cst_5 = arith.constant -5.000000e-01 : f32
    %24 = vector.broadcast %cst_5 : f32 to vector<16x128xf32>
    %25 = arith.mulf %6, %24 : vector<16x128xf32>
    %cst_6 = arith.constant 7.500000e-01 : f32
    %26 = vector.broadcast %cst_6 : f32 to vector<16x128xf32>
    %27 = arith.addf %26, %25 : vector<16x128xf32>
    %28 = arith.subf %6, %23 : vector<16x128xf32>
    %29 = math.absf %28 : vector<16x128xf32>
    %30 = math.sqrt %29 : vector<16x128xf32>
    %31 = arith.mulf %29, %30 : vector<16x128xf32>
    %32 = arith.mulf %19, %27 : vector<16x128xf32>
    %33 = arith.mulf %32, %31 : vector<16x128xf32>
    %34 = vector.shape_cast %33 : vector<16x128xf32> to vector<2x8x128xf32>
    %cst_7 = arith.constant dense<0.000000e+00> : vector<8x128xf32>
    %35 = vector.multi_reduction <add>, %34, %cst_7 [0] : vector<2x8x128xf32> to vector<8x128xf32>
    %36 = arith.addf %0, %35 : vector<8x128xf32>
    %c1_i32 = arith.constant 1 : i32
    %c0_8 = arith.constant 0 : index
    %c0_9 = arith.constant 0 : index
    %37 = vector.load %arg3[%c0_8, %c0_9] : memref<8x128xf32, #tpu.memory_space<vmem>>, vector<8x128xf32>
    tpu.vector_store %arg3[%c0_8, %c0_9], %36 {strides = array<i32>} : memref<8x128xf32, #tpu.memory_space<vmem>>, vector<8x128xf32>,
    return
  }
  func.func @transform_0(%arg0: i32) -> (i32, i32) {
    %c0_i32 = arith.constant 0 : i32
    %c0_i32_0 = arith.constant 0 : i32
    return %arg0, %c0_i32 : i32, i32
  }
  func.func @transform_1(%arg0: i32) -> (i32, i32) {
    %c0_i32 = arith.constant 0 : i32
    %c0_i32_0 = arith.constant 0 : i32
    return %arg0, %c0_i32 : i32, i32
  }
  func.func @transform_2(%arg0: i32) -> (i32, i32) {
    %c0_i32 = arith.constant 0 : i32
    %c0_i32_0 = arith.constant 0 : i32
    return %arg0, %c0_i32 : i32, i32
  }
}

</mosaic_0001>

<llo_original>
// kernel: tpu_custom_call.1
$region0: #{tpu_custom_call.1}
  #allocation0 [shape = 'u32[]', space=smem, size = 0x4, offset = 0x4, fixed_abs, tag = 'smem constant byte address 0x4 - core index']
  #allocation1 [shape = 'u32[144,128]{1,0:T(1,128)}', space=vmem, size = 0x12000, scoped, tag = 'internal scratch']
  %s0 = inlined_call_operand.hbm [shape: f32[16,128], index: 0, kind: input, shape index: {}]
  %s1 = inlined_call_operand.hbm [shape: f32[16,128], index: 1, kind: input, shape index: {}]
  %s2 = inlined_call_operand.hbm [shape: f32[8,128], index: 2, kind: output, shape index: {}]
  %s3 = sld [smem:[#allocation0]]
  $region26: #{tpu_custom_call.1} parent=0
    _
  %s5 = ssub.s32 1, %s3
  %s6 = scalar_select 0, %s5, %s3
  $region1: #{tpu_custom_call.1} parent=0
    #allocation2 [shape = 'u8[8192]{0}', space=vmem, size = 0x2000, scoped, tag = 'input window, operand 0, single buffered']
    #allocation3 [shape = 's32[1]{0}', space=sflag, size = 0x4, scoped, tag = 'scoped memory for tpu_custom_call.1']
    #allocation4 [shape = 's32[1]{0}', space=sflag, size = 0x4, scoped, tag = 'scoped memory for tpu_custom_call.1']
    #allocation5 [shape = 'u8[8192]{0}', space=vmem, size = 0x2000, scoped, tag = 'input window, operand 1, single buffered']
    #allocation6 [shape = 's32[1]{0}', space=sflag, size = 0x4, scoped, tag = 'scoped memory for tpu_custom_call.1']
    #allocation7 [shape = 'u8[4096]{0}', space=vmem, size = 0x1000, scoped, tag = 'output window, operand 0, single buffered']
    %7 = vsyncpa [#allocation3], 0
    %8 = vsyncpa [#allocation6], 0
    %9 = vsyncpa [#allocation4], 0
    // Predicated region
    $region2: #{tpu_custom_call.1} parent=1 // pred_check
      _
    $region3: #{tpu_custom_call.1} parent=1 // pred_check_branch
      %11 = sbr.rel (0) target = $region5
    $region4: #{tpu_custom_call.1} parent=1 // pred_region
      %s13 = ssub.s32 256, 256
      %14 = vsyncadd [#allocation3], %s13
      %s15 = sshll.u32 [#allocation2], 4
      %s16 = int_to_ptr.vmem [resolvable:$true] %s15
      %21 = dma.hbm_to_vmem [thread:$0]  %s0, 256, %s16, [#allocation3], 128, 128, 8
    $region5: #{tpu_custom_call.1} parent=1 // pred_fallthru
      _
    // Predicated region
    $region6: #{tpu_custom_call.1} parent=1 // pred_check
      _
    $region7: #{tpu_custom_call.1} parent=1 // pred_check_branch
      %23 = sbr.rel (0) target = $region9
    $region8: #{tpu_custom_call.1} parent=1 // pred_region
      %s25 = ssub.s32 256, 256
      %26 = vsyncadd [#allocation6], %s25
      %s27 = sshll.u32 [#allocation5], 4
      %s28 = int_to_ptr.vmem [resolvable:$true] %s27
      %33 = dma.hbm_to_vmem [thread:$0]  %s1, 256, %s28, [#allocation6], 128, 128, 8
    $region9: #{tpu_custom_call.1} parent=1 // pred_fallthru
      _
    // Predicated region
    $region10: #{tpu_custom_call.1} parent=1 // pred_check
      _
    $region11: #{tpu_custom_call.1} parent=1 // pred_check_branch
      %35 = sbr.rel (0) target = $region13
    $region12: #{tpu_custom_call.1} parent=1 // pred_region
      %36 = dma.done [#allocation3], 256
    $region13: #{tpu_custom_call.1} parent=1 // pred_fallthru
      _
    // Predicated region
    $region14: #{tpu_custom_call.1} parent=1 // pred_check
      _
    $region15: #{tpu_custom_call.1} parent=1 // pred_check_branch
      %38 = sbr.rel (0) target = $region17
    $region16: #{tpu_custom_call.1} parent=1 // pred_region
      %39 = dma.done [#allocation6], 256
    $region17: #{tpu_custom_call.1} parent=1 // pred_fallthru
      _
    %v40 = vld [vmem:[#allocation2] sm:$0xff]
    %v41 = vld [vmem:[#allocation2 + $0x8] sm:$0xff]
    %v42 = vld [vmem:[#allocation5] sm:$0xff]
    %v43 = vld [vmem:[#allocation5 + $0x8] sm:$0xff]
    %v44 = vand.u32 2147483647, %v40
    %v45 = vand.u32 2147483647, %v41
    %v46 = vsub.f32 0.0, %v44
    %v47 = vsub.f32 0.0, %v45
    %v48 = vmul.f32 %v46, 1.442695
    %v49 = vpow.pop %v48
    %v50 = vmul.f32 %v47, 1.442695
    %v51 = vpow.pop %v50
    %v52 = vadd.f32 %v49, 1.0
    %v53 = vadd.f32 %v51, 1.0
    %v54 = vrcp.pop %v52
    %v55 = vrcp.pop %v53
    %v56 = vmax.f32 %v40, 0.0
    %v57 = vmax.f32 %v41, 0.0
    %v58 = vmul.f32 %v40, %v42
    %v59 = vmul.f32 %v41, %v43
    %v60 = vsub.f32 %v56, %v58
    %v61 = vsub.f32 %v57, %v59
    %v62 = vlog2.pop %v52
    %v63 = vmul.f32 %v62, 0.6931472
    %v64 = vlog2.pop %v53
    %v65 = vmul.f32 %v64, 0.6931472
    %v66 = vadd.f32 %v60, %v63
    %v67 = vadd.f32 %v61, %v65
    %vm68 = vcmp.ge.f32.partialorder %v40, 0.0
    %vm69 = vcmp.ge.f32.partialorder %v41, 0.0
    %v70 = vmul.f32 %v49, %v54
    %v71 = vmul.f32 %v51, %v55
    %v72 = vsel %vm68, %v54, %v70
    %v73 = vsel %vm69, %v55, %v71
    %v74 = vmul.f32 %v42, -0.5
    %v75 = vmul.f32 %v43, -0.5
    %v76 = vadd.f32 %v74, 0.75
    %v77 = vadd.f32 %v75, 0.75
    %v78 = vsub.f32 %v42, %v72
    %v79 = vsub.f32 %v43, %v73
    %v80 = vand.u32 2147483647, %v78
    %v81 = vand.u32 2147483647, %v79
    %v82 = vrsqrt.pop %v80
    %v83 = vmul.f32 %v80, %v82
    %vm84 = vcmp.eq.f32.partialorder %v80, inf
    %v85 = vsel %vm84, %v80, %v83
    %vm86 = vcmp.eq.f32.partialorder %v80, 0.0
    %v87 = vand.u32 %v80, 2147483648
    %v88 = vsel %vm86, %v87, %v85
    %v89 = vrsqrt.pop %v81
    %v90 = vmul.f32 %v81, %v89
    %vm91 = vcmp.eq.f32.partialorder %v81, inf
    %v92 = vsel %vm91, %v81, %v90
    %vm93 = vcmp.eq.f32.partialorder %v81, 0.0
    %v94 = vand.u32 %v81, 2147483648
    %v95 = vsel %vm93, %v94, %v92
    %v96 = vmul.f32 %v80, %v88
    %v97 = vmul.f32 %v81, %v95
    %v98 = vmul.f32 %v66, %v76
    %v99 = vmul.f32 %v67, %v77
    %v100 = vmul.f32 %v98, %v96
    %v101 = vmul.f32 %v99, %v97
    %v102 = vadd.f32 %v100, %v101
    %v103 = vadd.f32 %v102, 0.0
    %104 = vst [vmem:[#allocation7] sm:$0xff] %v103
    // Predicated region
    $region18: #{tpu_custom_call.1} parent=1 // pred_check
      _
    $region19: #{tpu_custom_call.1} parent=1 // pred_check_branch
      %106 = sbr.rel (0) target = $region21
    $region20: #{tpu_custom_call.1} parent=1 // pred_region
      %s108 = ssub.s32 128, 128
      %109 = vsyncadd [#allocation4], %s108
      %s111 = sshll.u32 [#allocation7], 4
      %s112 = int_to_ptr.vmem [resolvable:$true] %s111
      %114 = dma.vmem_to_hbm [thread:$0]  %s112, 128, %s2, [#allocation4]
    $region21: #{tpu_custom_call.1} parent=1 // pred_fallthru
      _
    // Predicated region
    $region22: #{tpu_custom_call.1} parent=1 // pred_check
      _
    $region23: #{tpu_custom_call.1} parent=1 // pred_check_branch
      %116 = sbr.rel (0) target = $region25
    $region24: #{tpu_custom_call.1} parent=1 // pred_region
      %117 = dma.done [#allocation4], 128
    $region25: #{tpu_custom_call.1} parent=1 // pred_fallthru
      _
    %118 = vsyncpa [#allocation3], 1
    %119 = vsyncpa [#allocation6], 1
    %120 = vsyncpa [#allocation4], 1

</llo_original>
